<compile_context>
chip_gen: v5e
topology: v5e:2x2
jax: 0.10.0
libtpu: 0.0.40
codegen_flags: <defaults>
</compile_context>

<pallas_src>
import functools

import jax
import jax.numpy as jnp
from jax.experimental import pallas as pl
from jax.experimental.pallas import tpu as pltpu


def _round_up(n: int, m: int) -> int:
    return ((n + m - 1) // m) * m


def _default_num_tiles() -> int:
    """1 grid step on single-TC chips (v5e/v6e), 2 on dual-TC chips (v7x)."""
    try:
        kind = jax.devices()[0].device_kind.lower()
    except Exception:  # pragma: no cover - defensive
        return 1
    return 2 if "v7" in kind else 1


def mlp_kernel(x_ref, w1_ref, b1_ref, w2_ref, b2_ref, o_ref):
    # fc1 on the MXU: f32 inputs, f32 accumulation (Mosaic pads the 16-wide
    # contraction in vregs for free).
    h = jnp.dot(x_ref[...], w1_ref[...], preferred_element_type=jnp.float32)
    # Epilogue in f32: bias add + relu (VPU), then fc2 + bias + tanh (EUP).
    h = jnp.maximum(h + b1_ref[...], 0.0)
    y = jnp.dot(h, w2_ref[...], preferred_element_type=jnp.float32)
    o_ref[...] = jnp.tanh(y + b2_ref[...]).astype(o_ref.dtype)


@functools.partial(jax.jit, static_argnames=("num_tiles",))
def net_forward(x, w1, b1, w2, b2, *, num_tiles: int = 1):
    """Pallas equivalent of Net.forward.

    x : (B, input_size) f32
    w1: (input_size, hidden_size)  b1: (1, hidden_size)    [w = PyTorch W.T]
    w2: (hidden_size, output_size) b2: (1, output_size)
    Returns (B, output_size) f32.
    """
    B, K = x.shape
    H = w1.shape[1]
    O = w2.shape[1]

    # Batch tile: multiple of 8 sublanes; only the batch axis is ever padded.
    TB = _round_up(pl.cdiv(B, num_tiles), 8)
    Bp = TB * num_tiles
    xp = jnp.pad(x, ((0, Bp - B), (0, 0))) if Bp != B else x

    out = pl.pallas_call(
        mlp_kernel,
        out_shape=jax.ShapeDtypeStruct((Bp, O), jnp.float32),
        grid=(num_tiles,),
        in_specs=[
            pl.BlockSpec((TB, K), lambda i: (i, 0)),   # x: tiled over batch, raw f32
            pl.BlockSpec((K, H), lambda i: (0, 0)),    # w1: resident in VMEM
            pl.BlockSpec((1, H), lambda i: (0, 0)),    # b1
            pl.BlockSpec((H, O), lambda i: (0, 0)),    # w2: resident in VMEM
            pl.BlockSpec((1, O), lambda i: (0, 0)),    # b2
        ],
        out_specs=pl.BlockSpec((TB, O), lambda i: (i, 0)),
        compiler_params=pltpu.CompilerParams(
            dimension_semantics=("parallel",)),  # shards the 2-step grid on v7x
    )(xp, w1, b1, w2, b2)

    return out[:B] if Bp != B else out


def init_linear_params(key, in_features, out_features):
    """nn.Linear default init: U(-1/sqrt(fan_in), +1/sqrt(fan_in)); W stored as (in, out)."""
    kw, kb = jax.random.split(key)
    bound = 1.0 / jnp.sqrt(jnp.float32(in_features))
    w = jax.random.uniform(kw, (in_features, out_features), jnp.float32,
                           minval=-bound, maxval=bound)
    b = jax.random.uniform(kb, (1, out_features), jnp.float32,
                           minval=-bound, maxval=bound)
    return w, b


if __name__ == "__main__":
    input_size, hidden_size, output_size = 16, 32, 8
    batch = 256

    key = jax.random.PRNGKey(0)
    k_x, k_fc1, k_fc2 = jax.random.split(key, 3)

    x = jax.random.normal(k_x, (batch, input_size), jnp.float32)
    w1, b1 = init_linear_params(k_fc1, input_size, hidden_size)
    w2, b2 = init_linear_params(k_fc2, hidden_size, output_size)

    out = net_forward(x, w1, b1, w2, b2, num_tiles=_default_num_tiles())
    out = jax.block_until_ready(out)
    assert out.shape == (batch, output_size)

    # Pure-f32 PyTorch-equivalent reference.
    ref = jnp.tanh(jnp.maximum(x @ w1 + b1, 0.0) @ w2 + b2)
    assert jnp.allclose(out, ref, atol=2e-2, rtol=2e-2)

    print("KERNEL_OK")
</pallas_src>

<mosaic_0001>
module attributes {stable_mosaic.version = 11 : i64} {
  func.func @mlp_kernel(%arg0: i32, %arg1: memref<256x16xf32, #tpu.memory_space<vmem>>, %arg2: memref<16x32xf32, #tpu.memory_space<vmem>>, %arg3: memref<1x32xf32, #tpu.memory_space<vmem>>, %arg4: memref<32x8xf32, #tpu.memory_space<vmem>>, %arg5: memref<1x8xf32, #tpu.memory_space<vmem>>, %arg6: memref<256x8xf32, #tpu.memory_space<vmem>>) attributes {dimension_semantics = [#tpu.dimension_semantics<parallel>], iteration_bounds = array<i64: 1>, scalar_prefetch = 0 : i64, scratch_operands = 0 : i64, tpu.core_type = #tpu.core_type<tc>, window_params = [{transform_indices = @transform_0, window_bounds = array<i64: 256, 16>}, {pipeline_mode = #tpu.pipeline_mode<synchronous>, transform_indices = @transform_1, window_bounds = array<i64: 16, 32>}, {pipeline_mode = #tpu.pipeline_mode<synchronous>, transform_indices = @transform_2, window_bounds = array<i64: 1, 32>}, {pipeline_mode = #tpu.pipeline_mode<synchronous>, transform_indices = @transform_3, window_bounds = array<i64: 32, 8>}, {pipeline_mode = #tpu.pipeline_mode<synchronous>, transform_indices = @transform_4, window_bounds = array<i64: 1, 8>}, {transform_indices = @transform_5, window_bounds = array<i64: 256, 8>}]} {
    %c0 = arith.constant 0 : index
    %c0_0 = arith.constant 0 : index
    %0 = vector.load %arg1[%c0, %c0_0] : memref<256x16xf32, #tpu.memory_space<vmem>>, vector<256x16xf32>
    %c0_1 = arith.constant 0 : index
    %c0_2 = arith.constant 0 : index
    %1 = vector.load %arg2[%c0_1, %c0_2] : memref<16x32xf32, #tpu.memory_space<vmem>>, vector<16x32xf32>
    %cst = arith.constant dense<0.000000e+00> : vector<256x32xf32>
    %2 = tpu.matmul %0, %1, %cst {dimension_numbers = #tpu.dot_dimension_numbers<[1], [0], [0], [1], [0, 0, 1, 1], [], []>} : vector<256x16xf32>, vector<16x32xf32>, vector<256x32xf32> -> vector<256x32xf32>
    %c0_3 = arith.constant 0 : index
    %c0_4 = arith.constant 0 : index
    %3 = vector.load %arg3[%c0_3, %c0_4] : memref<1x32xf32, #tpu.memory_space<vmem>>, vector<1x32xf32>
    %4 = vector.broadcast %3 : vector<1x32xf32> to vector<256x32xf32>
    %5 = arith.addf %2, %4 : vector<256x32xf32>
    %cst_5 = arith.constant 0.000000e+00 : f32
    %6 = vector.broadcast %cst_5 : f32 to vector<256x32xf32>
    %7 = arith.maximumf %5, %6 : vector<256x32xf32>
    %c0_6 = arith.constant 0 : index
    %c0_7 = arith.constant 0 : index
    %8 = vector.load %arg4[%c0_6, %c0_7] : memref<32x8xf32, #tpu.memory_space<vmem>>, vector<32x8xf32>
    %cst_8 = arith.constant dense<0.000000e+00> : vector<256x8xf32>
    %9 = tpu.matmul %7, %8, %cst_8 {dimension_numbers = #tpu.dot_dimension_numbers<[1], [0], [0], [1], [0, 0, 1, 1], [], []>} : vector<256x32xf32>, vector<32x8xf32>, vector<256x8xf32> -> vector<256x8xf32>
    %c0_9 = arith.constant 0 : index
    %c0_10 = arith.constant 0 : index
    %10 = vector.load %arg5[%c0_9, %c0_10] : memref<1x8xf32, #tpu.memory_space<vmem>>, vector<1x8xf32>
    %11 = vector.broadcast %10 : vector<1x8xf32> to vector<256x8xf32>
    %12 = arith.addf %9, %11 : vector<256x8xf32>
    %13 = math.tanh %12 : vector<256x8xf32>
    %c0_11 = arith.constant 0 : index
    %c0_12 = arith.constant 0 : index
    %14 = vector.load %arg6[%c0_11, %c0_12] : memref<256x8xf32, #tpu.memory_space<vmem>>, vector<256x8xf32>
    tpu.vector_store %arg6[%c0_11, %c0_12], %13 {strides = array<i32>} : memref<256x8xf32, #tpu.memory_space<vmem>>, vector<256x8xf32>,
    return
  }
  func.func @transform_0(%arg0: i32) -> (i32, i32) {
    %c0_i32 = arith.constant 0 : i32
    %c0_i32_0 = arith.constant 0 : i32
    return %arg0, %c0_i32 : i32, i32
  }
  func.func @transform_1(%arg0: i32) -> (i32, i32) {
    %c0_i32 = arith.constant 0 : i32
    %c0_i32_0 = arith.constant 0 : i32
    %c0_i32_1 = arith.constant 0 : i32
    return %c0_i32, %c0_i32_0 : i32, i32
  }
  func.func @transform_2(%arg0: i32) -> (i32, i32) {
    %c0_i32 = arith.constant 0 : i32
    %c0_i32_0 = arith.constant 0 : i32
    %c0_i32_1 = arith.constant 0 : i32
    return %c0_i32, %c0_i32_0 : i32, i32
  }
  func.func @transform_3(%arg0: i32) -> (i32, i32) {
    %c0_i32 = arith.constant 0 : i32
    %c0_i32_0 = arith.constant 0 : i32
    %c0_i32_1 = arith.constant 0 : i32
    return %c0_i32, %c0_i32_0 : i32, i32
  }
  func.func @transform_4(%arg0: i32) -> (i32, i32) {
    %c0_i32 = arith.constant 0 : i32
    %c0_i32_0 = arith.constant 0 : i32
    %c0_i32_1 = arith.constant 0 : i32
    return %c0_i32, %c0_i32_0 : i32, i32
  }
  func.func @transform_5(%arg0: i32) -> (i32, i32) {
    %c0_i32 = arith.constant 0 : i32
    %c0_i32_0 = arith.constant 0 : i32
    return %arg0, %c0_i32 : i32, i32
  }
}

</mosaic_0001>

<llo_original>
// kernel: net_forward.1
$region0: #{net_forward.1}
  #allocation0 [shape = 'u32[]', space=smem, size = 0x4, offset = 0x4, fixed_abs, tag = 'smem constant byte address 0x4 - core index']
  #allocation1 [shape = 'u32[72,128]{1,0:T(1,128)}', space=vmem, size = 0x9000, scoped, tag = 'internal scratch']
  %s0 = inlined_call_operand.vmem [shape: f32[256,16], index: 0, kind: input, shape index: {}]
  %s1 = inlined_call_operand.vmem [shape: f32[16,32], index: 1, kind: input, shape index: {}]
  %s2 = inlined_call_operand.vmem [shape: f32[1,32], index: 2, kind: input, shape index: {}]
  %s3 = inlined_call_operand.vmem [shape: f32[32,8], index: 3, kind: input, shape index: {}]
  %s4 = inlined_call_operand.vmem [shape: f32[1,8], index: 4, kind: input, shape index: {}]
  %s5 = inlined_call_operand.vmem [shape: f32[256,8], index: 5, kind: output, shape index: {}]
  %s6 = sld [smem:[#allocation0]]
  $region30: #{net_forward.1} parent=0
    _
  %s8 = ssub.s32 1, %s6
  %s9 = scalar_select 0, %s8, %s6
  // Predicated region
  $region2: #{net_forward.1} parent=0 // pred_check
    _
  $region3: #{net_forward.1} parent=0 // pred_check_branch
    %11 = sbr.rel (0) target = $region5
  $region4: #{net_forward.1} parent=0 // pred_region
    _
  $region5: #{net_forward.1} parent=0 // pred_fallthru
    _
  // Predicated region
  $region6: #{net_forward.1} parent=0 // pred_check
    _
  $region7: #{net_forward.1} parent=0 // pred_check_branch
    %13 = sbr.rel (0) target = $region9
  $region8: #{net_forward.1} parent=0 // pred_region
    _
  $region9: #{net_forward.1} parent=0 // pred_fallthru
    _
  // Predicated region
  $region10: #{net_forward.1} parent=0 // pred_check
    _
  $region11: #{net_forward.1} parent=0 // pred_check_branch
    %15 = sbr.rel (0) target = $region13
  $region12: #{net_forward.1} parent=0 // pred_region
    _
  $region13: #{net_forward.1} parent=0 // pred_fallthru
    _
  // Predicated region
  $region14: #{net_forward.1} parent=0 // pred_check
    _
  $region15: #{net_forward.1} parent=0 // pred_check_branch
    %17 = sbr.rel (0) target = $region17
  $region16: #{net_forward.1} parent=0 // pred_region
    _
  $region17: #{net_forward.1} parent=0 // pred_fallthru
    _
  // Predicated region
  $region18: #{net_forward.1} parent=0 // pred_check
    _
  $region19: #{net_forward.1} parent=0 // pred_check_branch
    %19 = sbr.rel (0) target = $region21
  $region20: #{net_forward.1} parent=0 // pred_region
    _
  $region21: #{net_forward.1} parent=0 // pred_fallthru
    _
  %v20 = vld [vmem:[%s0] sm:$0xff]
  %v21 = vld [vmem:[%s0 + $0x8] sm:$0xff]
  %v22 = vld [vmem:[%s0 + $0x10] sm:$0xff]
  %v23 = vld [vmem:[%s0 + $0x18] sm:$0xff]
  %v24 = vld [vmem:[%s0 + $0x20] sm:$0xff]
  %v25 = vld [vmem:[%s0 + $0x28] sm:$0xff]
  %v26 = vld [vmem:[%s0 + $0x30] sm:$0xff]
  %v27 = vld [vmem:[%s0 + $0x38] sm:$0xff]
  %v28 = vld [vmem:[%s0 + $0x40] sm:$0xff]
  %v29 = vld [vmem:[%s0 + $0x48] sm:$0xff]
  %v30 = vld [vmem:[%s0 + $0x50] sm:$0xff]
  %v31 = vld [vmem:[%s0 + $0x58] sm:$0xff]
  %v32 = vld [vmem:[%s0 + $0x60] sm:$0xff]
  %v33 = vld [vmem:[%s0 + $0x68] sm:$0xff]
  %v34 = vld [vmem:[%s0 + $0x70] sm:$0xff]
  %v35 = vld [vmem:[%s0 + $0x78] sm:$0xff]
  %v36 = vld [vmem:[%s0 + $0x80] sm:$0xff]
  %v37 = vld [vmem:[%s0 + $0x88] sm:$0xff]
  %v38 = vld [vmem:[%s0 + $0x90] sm:$0xff]
  %v39 = vld [vmem:[%s0 + $0x98] sm:$0xff]
  %v40 = vld [vmem:[%s0 + $0xa0] sm:$0xff]
  %v41 = vld [vmem:[%s0 + $0xa8] sm:$0xff]
  %v42 = vld [vmem:[%s0 + $0xb0] sm:$0xff]
  %v43 = vld [vmem:[%s0 + $0xb8] sm:$0xff]
  %v44 = vld [vmem:[%s0 + $0xc0] sm:$0xff]
  %v45 = vld [vmem:[%s0 + $0xc8] sm:$0xff]
  %v46 = vld [vmem:[%s0 + $0xd0] sm:$0xff]
  %v47 = vld [vmem:[%s0 + $0xd8] sm:$0xff]
  %v48 = vld [vmem:[%s0 + $0xe0] sm:$0xff]
  %v49 = vld [vmem:[%s0 + $0xe8] sm:$0xff]
  %v50 = vld [vmem:[%s0 + $0xf0] sm:$0xff]
  %v51 = vld [vmem:[%s0 + $0xf8] sm:$0xff]
  %v52 = vld [vmem:[%s1] sm:$0xff]
  %v53 = vld [vmem:[%s1 + $0x8] sm:$0xff]
  %v54 = vld [vmem:[%s2] sm:$0x1]
  %v56 = vperm.slane %v54, 0
  %vm58 = vcmask 130048
  %v60 = vsel %vm58, %v20, 0
  %v63 = vsel %vm58, %v21, 0
  %v66 = vsel %vm58, %v22, 0
  %v69 = vsel %vm58, %v23, 0
  %v72 = vsel %vm58, %v24, 0
  %v75 = vsel %vm58, %v25, 0
  %v78 = vsel %vm58, %v26, 0
  %v81 = vsel %vm58, %v27, 0
  %v84 = vsel %vm58, %v28, 0
  %v87 = vsel %vm58, %v29, 0
  %v90 = vsel %vm58, %v30, 0
  %v93 = vsel %vm58, %v31, 0
  %v96 = vsel %vm58, %v32, 0
  %v99 = vsel %vm58, %v33, 0
  %v102 = vsel %vm58, %v34, 0
  %v105 = vsel %vm58, %v35, 0
  %v108 = vsel %vm58, %v36, 0
  %v111 = vsel %vm58, %v37, 0
  %v114 = vsel %vm58, %v38, 0
  %v117 = vsel %vm58, %v39, 0
  %v120 = vsel %vm58, %v40, 0
  %v123 = vsel %vm58, %v41, 0
  %v126 = vsel %vm58, %v42, 0
  %v129 = vsel %vm58, %v43, 0
  %v132 = vsel %vm58, %v44, 0
  %v135 = vsel %vm58, %v45, 0
  %v138 = vsel %vm58, %v46, 0
  %v141 = vsel %vm58, %v47, 0
  %v144 = vsel %vm58, %v48, 0
  %v147 = vsel %vm58, %v49, 0
  %v150 = vsel %vm58, %v50, 0
  %v153 = vsel %vm58, %v51, 0
  %155 = vmatpush.msra.mxu0 0.0
  %156 = vmatpush.msra.mxu0 0.0
  %157 = vmatpush.msra.mxu0 0.0
  %158 = vmatpush.msra.mxu0 0.0
  %159 = vmatpush.msra.mxu0 0.0
  %160 = vmatpush.msra.mxu0 0.0
  %161 = vmatpush.msra.mxu0 0.0
  %162 = vmatpush.msra.mxu0 0.0
  %163 = vmatpush.msra.mxu0 0.0
  %164 = vmatpush.msra.mxu0 0.0
  %165 = vmatpush.msra.mxu0 0.0
  %166 = vmatpush.msra.mxu0 0.0
  %167 = vmatpush.msra.mxu0 0.0
  %168 = vmatpush.msra.mxu0 0.0
  %169 = vmatpush.msra.mxu0 %v53
  %170 = vmatpush.msra.mxu0 %v52
  %171 = vmatmul.f32.gmra.mxu0 %v60
  %v172 = vpop.f32.mrf.mxu0
  %v173 = vadd.f32 %v56, %v172
  %174 = vmatmul.f32.gmra.mxu0 %v63
  %v175 = vpop.f32.mrf.mxu0
  %v176 = vadd.f32 %v56, %v175
  %177 = vmatmul.f32.gmra.mxu0 %v66
  %v178 = vpop.f32.mrf.mxu0
  %v179 = vadd.f32 %v56, %v178
  %180 = vmatmul.f32.gmra.mxu0 %v69
  %v181 = vpop.f32.mrf.mxu0
  %v182 = vadd.f32 %v56, %v181
  %183 = vmatmul.f32.gmra.mxu0 %v72
  %v184 = vpop.f32.mrf.mxu0
  %v185 = vadd.f32 %v56, %v184
  %186 = vmatmul.f32.gmra.mxu0 %v75
  %v187 = vpop.f32.mrf.mxu0
  %v188 = vadd.f32 %v56, %v187
  %189 = vmatmul.f32.gmra.mxu0 %v78
  %v190 = vpop.f32.mrf.mxu0
  %v191 = vadd.f32 %v56, %v190
  %192 = vmatmul.f32.gmra.mxu0 %v81
  %v193 = vpop.f32.mrf.mxu0
  %v194 = vadd.f32 %v56, %v193
  %195 = vmatmul.f32.gmra.mxu0 %v84
  %v196 = vpop.f32.mrf.mxu0
  %v197 = vadd.f32 %v56, %v196
  %198 = vmatmul.f32.gmra.mxu0 %v87
  %v199 = vpop.f32.mrf.mxu0
  %v200 = vadd.f32 %v56, %v199
  %201 = vmatmul.f32.gmra.mxu0 %v90
  %v202 = vpop.f32.mrf.mxu0
  %v203 = vadd.f32 %v56, %v202
  %204 = vmatmul.f32.gmra.mxu0 %v93
  %v205 = vpop.f32.mrf.mxu0
  %v206 = vadd.f32 %v56, %v205
  %207 = vmatmul.f32.gmra.mxu0 %v96
  %v208 = vpop.f32.mrf.mxu0
  %v209 = vadd.f32 %v56, %v208
  %210 = vmatmul.f32.gmra.mxu0 %v99
  %v211 = vpop.f32.mrf.mxu0
  %v212 = vadd.f32 %v56, %v211
  %213 = vmatmul.f32.gmra.mxu0 %v102
  %v214 = vpop.f32.mrf.mxu0
  %v215 = vadd.f32 %v56, %v214
  %216 = vmatmul.f32.gmra.mxu0 %v105
  %v217 = vpop.f32.mrf.mxu0
  %v218 = vadd.f32 %v56, %v217
  %219 = vmatmul.f32.gmra.mxu0 %v108
  %v220 = vpop.f32.mrf.mxu0
  %v221 = vadd.f32 %v56, %v220
  %222 = vmatmul.f32.gmra.mxu0 %v111
  %v223 = vpop.f32.mrf.mxu0
  %v224 = vadd.f32 %v56, %v223
  %225 = vmatmul.f32.gmra.mxu0 %v114
  %v226 = vpop.f32.mrf.mxu0
  %v227 = vadd.f32 %v56, %v226
  %228 = vmatmul.f32.gmra.mxu0 %v117
  %v229 = vpop.f32.mrf.mxu0
  %v230 = vadd.f32 %v56, %v229
  %231 = vmatmul.f32.gmra.mxu0 %v120
  %v232 = vpop.f32.mrf.mxu0
  %v233 = vadd.f32 %v56, %v232
  %234 = vmatmul.f32.gmra.mxu0 %v123
  %v235 = vpop.f32.mrf.mxu0
  %v236 = vadd.f32 %v56, %v235
  %237 = vmatmul.f32.gmra.mxu0 %v126
  %v238 = vpop.f32.mrf.mxu0
  %v239 = vadd.f32 %v56, %v238
  %240 = vmatmul.f32.gmra.mxu0 %v129
  %v241 = vpop.f32.mrf.mxu0
  %v242 = vadd.f32 %v56, %v241
  %243 = vmatmul.f32.gmra.mxu0 %v132
  %v244 = vpop.f32.mrf.mxu0
  %v245 = vadd.f32 %v56, %v244
  %246 = vmatmul.f32.gmra.mxu0 %v135
  %v247 = vpop.f32.mrf.mxu0
  %v248 = vadd.f32 %v56, %v247
  %249 = vmatmul.f32.gmra.mxu0 %v138
  %v250 = vpop.f32.mrf.mxu0
  %v251 = vadd.f32 %v56, %v250
  %252 = vmatmul.f32.gmra.mxu0 %v141
  %v253 = vpop.f32.mrf.mxu0
  %v254 = vadd.f32 %v56, %v253
  %255 = vmatmul.f32.gmra.mxu0 %v144
  %v256 = vpop.f32.mrf.mxu0
  %v257 = vadd.f32 %v56, %v256
  %258 = vmatmul.f32.gmra.mxu0 %v147
  %v259 = vpop.f32.mrf.mxu0
  %v260 = vadd.f32 %v56, %v259
  %261 = vmatmul.f32.gmra.mxu0 %v150
  %v262 = vpop.f32.mrf.mxu0
  %v263 = vadd.f32 %v56, %v262
  %264 = vmatmul.f32.gmra.mxu0 %v153
  %v265 = vpop.f32.mrf.mxu0
  %v266 = vadd.f32 %v56, %v265
  %267 = vdwg.mxu0
  %v268 = vmax.f32 %v173, 0.0
  %v269 = vmax.f32 %v176, 0.0
  %v270 = vmax.f32 %v179, 0.0
  %v271 = vmax.f32 %v182, 0.0
  %v272 = vmax.f32 %v185, 0.0
  %v273 = vmax.f32 %v188, 0.0
  %v274 = vmax.f32 %v191, 0.0
  %v275 = vmax.f32 %v194, 0.0
  %v276 = vmax.f32 %v197, 0.0
  %v277 = vmax.f32 %v200, 0.0
  %v278 = vmax.f32 %v203, 0.0
  %v279 = vmax.f32 %v206, 0.0
  %v280 = vmax.f32 %v209, 0.0
  %v281 = vmax.f32 %v212, 0.0
  %v282 = vmax.f32 %v215, 0.0
  %v283 = vmax.f32 %v218, 0.0
  %v284 = vmax.f32 %v221, 0.0
  %v285 = vmax.f32 %v224, 0.0
  %v286 = vmax.f32 %v227, 0.0
  %v287 = vmax.f32 %v230, 0.0
  %v288 = vmax.f32 %v233, 0.0
  %v289 = vmax.f32 %v236, 0.0
  %v290 = vmax.f32 %v239, 0.0
  %v291 = vmax.f32 %v242, 0.0
  %v292 = vmax.f32 %v245, 0.0
  %v293 = vmax.f32 %v248, 0.0
  %v294 = vmax.f32 %v251, 0.0
  %v295 = vmax.f32 %v254, 0.0
  %v296 = vmax.f32 %v257, 0.0
  %v297 = vmax.f32 %v260, 0.0
  %v298 = vmax.f32 %v263, 0.0
  %v299 = vmax.f32 %v266, 0.0
  %v300 = vld [vmem:[%s3] sm:$0xff]
  %v301 = vld [vmem:[%s3 + $0x8] sm:$0xff]
  %v302 = vld [vmem:[%s3 + $0x10] sm:$0xff]
  %v303 = vld [vmem:[%s3 + $0x18] sm:$0xff]
  %v304 = vld [vmem:[%s4] sm:$0x1]
  %v306 = vperm.slane %v304, 0
  %vm308 = vcmask 261120
  %v310 = vsel %vm308, %v268, 0
  %v313 = vsel %vm308, %v269, 0
  %v316 = vsel %vm308, %v270, 0
  %v319 = vsel %vm308, %v271, 0
  %v322 = vsel %vm308, %v272, 0
  %v325 = vsel %vm308, %v273, 0
  %v328 = vsel %vm308, %v274, 0
  %v331 = vsel %vm308, %v275, 0
  %v334 = vsel %vm308, %v276, 0
  %v337 = vsel %vm308, %v277, 0
  %v340 = vsel %vm308, %v278, 0
  %v343 = vsel %vm308, %v279, 0
  %v346 = vsel %vm308, %v280, 0
  %v349 = vsel %vm308, %v281, 0
  %v352 = vsel %vm308, %v282, 0
  %v355 = vsel %vm308, %v283, 0
  %v358 = vsel %vm308, %v284, 0
  %v361 = vsel %vm308, %v285, 0
  %v364 = vsel %vm308, %v286, 0
  %v367 = vsel %vm308, %v287, 0
  %v370 = vsel %vm308, %v288, 0
  %v373 = vsel %vm308, %v289, 0
  %v376 = vsel %vm308, %v290, 0
  %v379 = vsel %vm308, %v291, 0
  %v382 = vsel %vm308, %v292, 0
  %v385 = vsel %vm308, %v293, 0
  %v388 = vsel %vm308, %v294, 0
  %v391 = vsel %vm308, %v295, 0
  %v394 = vsel %vm308, %v296, 0
  %v397 = vsel %vm308, %v297, 0
  %v400 = vsel %vm308, %v298, 0
  %v403 = vsel %vm308, %v299, 0
  %405 = vmatpush.msra.mxu0 0.0
  %406 = vmatpush.msra.mxu0 0.0
  %407 = vmatpush.msra.mxu0 0.0
  %408 = vmatpush.msra.mxu0 0.0
  %409 = vmatpush.msra.mxu0 0.0
  %410 = vmatpush.msra.mxu0 0.0
  %411 = vmatpush.msra.mxu0 0.0
  %412 = vmatpush.msra.mxu0 0.0
  %413 = vmatpush.msra.mxu0 0.0
  %414 = vmatpush.msra.mxu0 0.0
  %415 = vmatpush.msra.mxu0 0.0
  %416 = vmatpush.msra.mxu0 0.0
  %417 = vmatpush.msra.mxu0 %v303
  %418 = vmatpush.msra.mxu0 %v302
  %419 = vmatpush.msra.mxu0 %v301
  %420 = vmatpush.msra.mxu0 %v300
  %421 = vmatmul.f32.gmra.mxu0 %v310
  %v422 = vpop.f32.mrf.mxu0
  %v423 = vadd.f32 %v306, %v422
  %424 = vmatmul.f32.gmra.mxu0 %v313
  %v425 = vpop.f32.mrf.mxu0
  %v426 = vadd.f32 %v306, %v425
  %427 = vmatmul.f32.gmra.mxu0 %v316
  %v428 = vpop.f32.mrf.mxu0
  %v429 = vadd.f32 %v306, %v428
  %430 = vmatmul.f32.gmra.mxu0 %v319
  %v431 = vpop.f32.mrf.mxu0
  %v432 = vadd.f32 %v306, %v431
  %433 = vmatmul.f32.gmra.mxu0 %v322
  %v434 = vpop.f32.mrf.mxu0
  %v435 = vadd.f32 %v306, %v434
  %436 = vmatmul.f32.gmra.mxu0 %v325
  %v437 = vpop.f32.mrf.mxu0
  %v438 = vadd.f32 %v306, %v437
  %439 = vmatmul.f32.gmra.mxu0 %v328
  %v440 = vpop.f32.mrf.mxu0
  %v441 = vadd.f32 %v306, %v440
  %442 = vmatmul.f32.gmra.mxu0 %v331
  %v443 = vpop.f32.mrf.mxu0
  %v444 = vadd.f32 %v306, %v443
  %445 = vmatmul.f32.gmra.mxu0 %v334
  %v446 = vpop.f32.mrf.mxu0
  %v447 = vadd.f32 %v306, %v446
  %448 = vmatmul.f32.gmra.mxu0 %v337
  %v449 = vpop.f32.mrf.mxu0
  %v450 = vadd.f32 %v306, %v449
  %451 = vmatmul.f32.gmra.mxu0 %v340
  %v452 = vpop.f32.mrf.mxu0
  %v453 = vadd.f32 %v306, %v452
  %454 = vmatmul.f32.gmra.mxu0 %v343
  %v455 = vpop.f32.mrf.mxu0
  %v456 = vadd.f32 %v306, %v455
  %457 = vmatmul.f32.gmra.mxu0 %v346
  %v458 = vpop.f32.mrf.mxu0
  %v459 = vadd.f32 %v306, %v458
  %460 = vmatmul.f32.gmra.mxu0 %v349
  %v461 = vpop.f32.mrf.mxu0
  %v462 = vadd.f32 %v306, %v461
  %463 = vmatmul.f32.gmra.mxu0 %v352
  %v464 = vpop.f32.mrf.mxu0
  %v465 = vadd.f32 %v306, %v464
  %466 = vmatmul.f32.gmra.mxu0 %v355
  %v467 = vpop.f32.mrf.mxu0
  %v468 = vadd.f32 %v306, %v467
  %469 = vmatmul.f32.gmra.mxu0 %v358
  %v470 = vpop.f32.mrf.mxu0
  %v471 = vadd.f32 %v306, %v470
  %472 = vmatmul.f32.gmra.mxu0 %v361
  %v473 = vpop.f32.mrf.mxu0
  %v474 = vadd.f32 %v306, %v473
  %475 = vmatmul.f32.gmra.mxu0 %v364
  %v476 = vpop.f32.mrf.mxu0
  %v477 = vadd.f32 %v306, %v476
  %478 = vmatmul.f32.gmra.mxu0 %v367
  %v479 = vpop.f32.mrf.mxu0
  %v480 = vadd.f32 %v306, %v479
  %481 = vmatmul.f32.gmra.mxu0 %v370
  %v482 = vpop.f32.mrf.mxu0
  %v483 = vadd.f32 %v306, %v482
  %484 = vmatmul.f32.gmra.mxu0 %v373
  %v485 = vpop.f32.mrf.mxu0
  %v486 = vadd.f32 %v306, %v485
  %487 = vmatmul.f32.gmra.mxu0 %v376
  %v488 = vpop.f32.mrf.mxu0
  %v489 = vadd.f32 %v306, %v488
  %490 = vmatmul.f32.gmra.mxu0 %v379
  %v491 = vpop.f32.mrf.mxu0
  %v492 = vadd.f32 %v306, %v491
  %493 = vmatmul.f32.gmra.mxu0 %v382
  %v494 = vpop.f32.mrf.mxu0
  %v495 = vadd.f32 %v306, %v494
  %496 = vmatmul.f32.gmra.mxu0 %v385
  %v497 = vpop.f32.mrf.mxu0
  %v498 = vadd.f32 %v306, %v497
  %499 = vmatmul.f32.gmra.mxu0 %v388
  %v500 = vpop.f32.mrf.mxu0
  %v501 = vadd.f32 %v306, %v500
  %502 = vmatmul.f32.gmra.mxu0 %v391
  %v503 = vpop.f32.mrf.mxu0
  %v504 = vadd.f32 %v306, %v503
  %505 = vmatmul.f32.gmra.mxu0 %v394
  %v506 = vpop.f32.mrf.mxu0
  %v507 = vadd.f32 %v306, %v506
  %508 = vmatmul.f32.gmra.mxu0 %v397
  %v509 = vpop.f32.mrf.mxu0
  %v510 = vadd.f32 %v306, %v509
  %511 = vmatmul.f32.gmra.mxu0 %v400
  %v512 = vpop.f32.mrf.mxu0
  %v513 = vadd.f32 %v306, %v512
  %514 = vmatmul.f32.gmra.mxu0 %v403
  %v515 = vpop.f32.mrf.mxu0
  %v516 = vadd.f32 %v306, %v515
  %517 = vdwg.mxu0
  %v518 = vtanh.pop %v423
  %v519 = vtanh.pop %v426
  %v520 = vtanh.pop %v429
  %v521 = vtanh.pop %v432
  %v522 = vtanh.pop %v435
  %v523 = vtanh.pop %v438
  %v524 = vtanh.pop %v441
  %v525 = vtanh.pop %v444
  %v526 = vtanh.pop %v447
  %v527 = vtanh.pop %v450
  %v528 = vtanh.pop %v453
  %v529 = vtanh.pop %v456
  %v530 = vtanh.pop %v459
  %v531 = vtanh.pop %v462
  %v532 = vtanh.pop %v465
  %v533 = vtanh.pop %v468
  %v534 = vtanh.pop %v471
  %v535 = vtanh.pop %v474
  %v536 = vtanh.pop %v477
  %v537 = vtanh.pop %v480
  %v538 = vtanh.pop %v483
  %v539 = vtanh.pop %v486
  %v540 = vtanh.pop %v489
  %v541 = vtanh.pop %v492
  %v542 = vtanh.pop %v495
  %v543 = vtanh.pop %v498
  %v544 = vtanh.pop %v501
  %v545 = vtanh.pop %v504
  %v546 = vtanh.pop %v507
  %v547 = vtanh.pop %v510
  %v548 = vtanh.pop %v513
  %v549 = vtanh.pop %v516
  %vm550 = vcmask 64512
  %551 = vst.msk [vmem:[%s5] sm:$0xff] %vm550, %v518
  %552 = vst.msk [vmem:[%s5 + $0x8] sm:$0xff] %vm550, %v519
  %553 = vst.msk [vmem:[%s5 + $0x10] sm:$0xff] %vm550, %v520
  %554 = vst.msk [vmem:[%s5 + $0x18] sm:$0xff] %vm550, %v521
  %555 = vst.msk [vmem:[%s5 + $0x20] sm:$0xff] %vm550, %v522
  %556 = vst.msk [vmem:[%s5 + $0x28] sm:$0xff] %vm550, %v523
  %557 = vst.msk [vmem:[%s5 + $0x30] sm:$0xff] %vm550, %v524
  %558 = vst.msk [vmem:[%s5 + $0x38] sm:$0xff] %vm550, %v525
  %559 = vst.msk [vmem:[%s5 + $0x40] sm:$0xff] %vm550, %v526
  %560 = vst.msk [vmem:[%s5 + $0x48] sm:$0xff] %vm550, %v527
  %561 = vst.msk [vmem:[%s5 + $0x50] sm:$0xff] %vm550, %v528
  %562 = vst.msk [vmem:[%s5 + $0x58] sm:$0xff] %vm550, %v529
  %563 = vst.msk [vmem:[%s5 + $0x60] sm:$0xff] %vm550, %v530
  %564 = vst.msk [vmem:[%s5 + $0x68] sm:$0xff] %vm550, %v531
  %565 = vst.msk [vmem:[%s5 + $0x70] sm:$0xff] %vm550, %v532
  %566 = vst.msk [vmem:[%s5 + $0x78] sm:$0xff] %vm550, %v533
  %567 = vst.msk [vmem:[%s5 + $0x80] sm:$0xff] %vm550, %v534
  %568 = vst.msk [vmem:[%s5 + $0x88] sm:$0xff] %vm550, %v535
  %569 = vst.msk [vmem:[%s5 + $0x90] sm:$0xff] %vm550, %v536
  %570 = vst.msk [vmem:[%s5 + $0x98] sm:$0xff] %vm550, %v537
  %571 = vst.msk [vmem:[%s5 + $0xa0] sm:$0xff] %vm550, %v538
  %572 = vst.msk [vmem:[%s5 + $0xa8] sm:$0xff] %vm550, %v539
  %573 = vst.msk [vmem:[%s5 + $0xb0] sm:$0xff] %vm550, %v540
  %574 = vst.msk [vmem:[%s5 + $0xb8] sm:$0xff] %vm550, %v541
  %575 = vst.msk [vmem:[%s5 + $0xc0] sm:$0xff] %vm550, %v542
  %576 = vst.msk [vmem:[%s5 + $0xc8] sm:$0xff] %vm550, %v543
  %577 = vst.msk [vmem:[%s5 + $0xd0] sm:$0xff] %vm550, %v544
  %578 = vst.msk [vmem:[%s5 + $0xd8] sm:$0xff] %vm550, %v545
  %579 = vst.msk [vmem:[%s5 + $0xe0] sm:$0xff] %vm550, %v546
  %580 = vst.msk [vmem:[%s5 + $0xe8] sm:$0xff] %vm550, %v547
  %581 = vst.msk [vmem:[%s5 + $0xf0] sm:$0xff] %vm550, %v548
  %582 = vst.msk [vmem:[%s5 + $0xf8] sm:$0xff] %vm550, %v549
  // Predicated region
  $region22: #{net_forward.1} parent=0 // pred_check
    _
  $region23: #{net_forward.1} parent=0 // pred_check_branch
    %584 = sbr.rel (0) target = $region25
  $region24: #{net_forward.1} parent=0 // pred_region
    _
  $region25: #{net_forward.1} parent=0 // pred_fallthru
    _
  // Predicated region
  $region26: #{net_forward.1} parent=0 // pred_check
    _
  $region27: #{net_forward.1} parent=0 // pred_check_branch
    %586 = sbr.rel (0) target = $region29
  $region28: #{net_forward.1} parent=0 // pred_region
    _
  $region29: #{net_forward.1} parent=0 // pred_fallthru
    _

</llo_original>
